<compile_context>
chip_gen: v6e
topology: v6e:2x2x1
jax: 0.10.0
libtpu: 0.0.40
codegen_flags: <defaults>
</compile_context>

<pallas_src>
import math

import jax
import jax.numpy as jnp
from jax.experimental import pallas as pl
from jax.experimental.pallas import tpu as pltpu


def _pos_enc_add_kernel(x_ref, pe_ref, o_ref):
    # x_ref: (tb, S, td); pe_ref: (1, S, td), broadcast over the batch rows.
    o_ref[...] = (x_ref[...] + pe_ref[...]).astype(o_ref.dtype)


def _cdiv(a, b):
    return -(-a // b)


def _vmem_capacity_bytes():
    try:
        return int(pltpu.get_tpu_info().vmem_capacity_bytes)
    except Exception:
        return 64 << 20   # conservative fallback: v7x per-TensorCore VMEM


def _is_dual_tensorcore():
    # v7x packs 2 TensorCores per chip; v5e/v6e have one.
    try:
        kind = jax.devices()[0].device_kind.lower()
    except Exception:
        return False
    return "v7" in kind


def _choose_tiles(B, S, D, itemsize, vmem_budget_bytes, dual_core):
    """Pick (tb, td): batch rows per step and lane tile so the double-buffered
    working set (2 x-in blocks + 2 out blocks) stays inside the VMEM budget."""
    # Lane tile: full D unless even a single (1, S, D) row blows the budget.
    td = D
    if 4 * S * D * itemsize > vmem_budget_bytes and D > 128:
        td = max(128, (vmem_budget_bytes // (4 * S * itemsize * 128)) * 128)
        td = min(td, D)
    row_bytes = S * td * itemsize
    tb = max(1, min(B, vmem_budget_bytes // (4 * row_bytes)))
    if dual_core and B >= 2:
        # Both v7x TensorCores should get work: >= 2 (ideally even) row steps.
        nb = _cdiv(B, tb)
        if nb < 2 or nb % 2:
            tb = _cdiv(B, max(2, nb + (nb % 2)))
    return tb, td


def positional_encoding_forward(x, pe, dropout_p=0.0, *, vmem_budget_bytes=None):
    """x: (B, S, D); pe: (1, max_len, D).  Returns x + pe[:, :S, :]."""
    if dropout_p != 0.0:
        # TODO(synk): in-kernel dropout via pltpu.prng_seed + prng_random_bits
        # if a training-mode path is ever needed (module default is p=0.0).
        raise NotImplementedError("dropout_p > 0 not supported")

    B, S, D = x.shape
    # Static slice matching self.pe[:, :x.size(1)]. pe should already be built
    # in the model dtype; the astype below is then a no-op.
    # NOTE: for bf16/fp16 models the sum is taken in the low-precision dtype
    # (PyTorch keeps an f32 buffer and promotes); expect ~1-ulp differences.
    pe_slab = pe[:, :S, :]
    if pe_slab.dtype != x.dtype:
        pe_slab = pe_slab.astype(x.dtype)

    capacity = _vmem_capacity_bytes()
    vmem_limit = (3 * capacity) // 4               # headroom for Mosaic scratch
    budget = (vmem_budget_bytes if vmem_budget_bytes is not None
              else (3 * capacity) // 8)

    dual_core = _is_dual_tensorcore()
    itemsize = jnp.dtype(x.dtype).itemsize
    tb, td = _choose_tiles(B, S, D, itemsize, budget, dual_core)
    nb, nd = _cdiv(B, tb), _cdiv(D, td)

    # Only core_parallel actually changes codegen; it needs >=2 (even) steps.
    row_sem = (pltpu.CORE_PARALLEL
               if (dual_core and nb >= 2 and nb % 2 == 0) else pltpu.PARALLEL)

    out = pl.pallas_call(
        _pos_enc_add_kernel,
        out_shape=jax.ShapeDtypeStruct((B, S, D), x.dtype),
        grid_spec=pltpu.PrefetchScalarGridSpec(
            num_scalar_prefetch=0,
            grid=(nb, nd),
            in_specs=[
                pl.BlockSpec((tb, S, td), lambda i, j: (i, 0, j)),   # x rows
                pl.BlockSpec((1, S, td), lambda i, j: (0, 0, j)),    # pe (bcast)
            ],
            out_specs=pl.BlockSpec((tb, S, td), lambda i, j: (i, 0, j)),
        ),
        compiler_params=pltpu.CompilerParams(
            dimension_semantics=(row_sem, pltpu.ARBITRARY),
            vmem_limit_bytes=vmem_limit,
        ),
    )(x, pe_slab)
    return out


def make_positional_encoding_buffer(d_model, max_len=32, dtype=jnp.float32):
    """Deterministic sinusoidal buffer, identical to the PyTorch __init__."""
    position = jnp.arange(max_len, dtype=jnp.float32)[:, None]          # (max_len, 1)
    div_term = jnp.exp(
        jnp.arange(0, d_model, 2, dtype=jnp.float32)
        * (-math.log(10000.0) / d_model)
    )                                                                    # (ceil(d/2),)
    pe = jnp.zeros((1, max_len, d_model), dtype=jnp.float32)
    pe = pe.at[0, :, 0::2].set(jnp.sin(position * div_term))
    # Guard for odd d_model: the cos slice has floor(d/2) columns.
    pe = pe.at[0, :, 1::2].set(jnp.cos(position * div_term[: d_model // 2]))
    return pe.astype(dtype)


def positional_encoding_ref(x, pe):
    return x + pe[:, : x.shape[1], :].astype(x.dtype)


if __name__ == "__main__":
    max_len = 32
    key = jax.random.PRNGKey(0)

    # Case 1: module-consistent small shapes (batch=2, seq=8, d_model=32).
    B, S, D = 2, 8, 32
    pe = make_positional_encoding_buffer(D, max_len=max_len)
    x = jax.random.normal(key, (B, S, D), dtype=jnp.float32)
    out = jax.block_until_ready(positional_encoding_forward(x, pe))
    ref = positional_encoding_ref(x, pe)
    assert out.shape == (B, S, D)
    assert jnp.allclose(out, ref, atol=1e-6, rtol=1e-6)

    # Case 2: ragged cdiv grid (B=5 with a tiny forced budget -> 2 rows/step,
    # 3 row steps, masked tail block).
    B2 = 5
    x2 = jax.random.normal(jax.random.PRNGKey(1), (B2, S, D), dtype=jnp.float32)
    tiny_budget = 4 * (S * D * 4) * 2
    out2 = jax.block_until_ready(
        positional_encoding_forward(x2, pe, vmem_budget_bytes=tiny_budget))
    assert jnp.allclose(out2, positional_encoding_ref(x2, pe), atol=1e-6, rtol=1e-6)

    # Case 3: lane-axis fallback tiling (d_model=256, budget < one full row
    # -> td=128, 2-D grid).
    D3 = 256
    pe3 = make_positional_encoding_buffer(D3, max_len=max_len)
    x3 = jax.random.normal(jax.random.PRNGKey(2), (2, S, D3), dtype=jnp.float32)
    out3 = jax.block_until_ready(
        positional_encoding_forward(x3, pe3, vmem_budget_bytes=4 * S * 128 * 4))
    assert jnp.allclose(out3, positional_encoding_ref(x3, pe3), atol=1e-6, rtol=1e-6)

    print("KERNEL_OK")
</pallas_src>

<mosaic_0001>
module attributes {stable_mosaic.version = 11 : i64} {
  func.func @_pos_enc_add_kernel(%arg0: i32, %arg1: i32, %arg2: memref<2x8x32xf32, #tpu.memory_space<vmem>>, %arg3: memref<1x8x32xf32, #tpu.memory_space<vmem>>, %arg4: memref<2x8x32xf32, #tpu.memory_space<vmem>>) attributes {dimension_semantics = [#tpu.dimension_semantics<parallel>, #tpu.dimension_semantics<arbitrary>], iteration_bounds = array<i64: 1, 1>, scalar_prefetch = 0 : i64, scratch_operands = 0 : i64, tpu.core_type = #tpu.core_type<tc>, window_params = [{transform_indices = @transform_0, window_bounds = array<i64: 2, 8, 32>}, {transform_indices = @transform_1, window_bounds = array<i64: 1, 8, 32>}, {transform_indices = @transform_2, window_bounds = array<i64: 2, 8, 32>}]} {
    %c0 = arith.constant 0 : index
    %c0_0 = arith.constant 0 : index
    %c0_1 = arith.constant 0 : index
    %0 = vector.load %arg2[%c0, %c0_0, %c0_1] : memref<2x8x32xf32, #tpu.memory_space<vmem>>, vector<2x8x32xf32>
    %c0_2 = arith.constant 0 : index
    %c0_3 = arith.constant 0 : index
    %c0_4 = arith.constant 0 : index
    %1 = vector.load %arg3[%c0_2, %c0_3, %c0_4] : memref<1x8x32xf32, #tpu.memory_space<vmem>>, vector<1x8x32xf32>
    %2 = vector.broadcast %1 : vector<1x8x32xf32> to vector<2x8x32xf32>
    %3 = arith.addf %0, %2 : vector<2x8x32xf32>
    %c0_5 = arith.constant 0 : index
    %c0_6 = arith.constant 0 : index
    %c0_7 = arith.constant 0 : index
    %4 = vector.load %arg4[%c0_5, %c0_6, %c0_7] : memref<2x8x32xf32, #tpu.memory_space<vmem>>, vector<2x8x32xf32>
    tpu.vector_store %arg4[%c0_5, %c0_6, %c0_7], %3 {strides = array<i32>} : memref<2x8x32xf32, #tpu.memory_space<vmem>>, vector<2x8x32xf32>,
    return
  }
  func.func @transform_0(%arg0: i32, %arg1: i32) -> (i32, i32, i32) {
    %c0_i32 = arith.constant 0 : i32
    %c0_i32_0 = arith.constant 0 : i32
    return %arg0, %c0_i32, %arg1 : i32, i32, i32
  }
  func.func @transform_1(%arg0: i32, %arg1: i32) -> (i32, i32, i32) {
    %c0_i32 = arith.constant 0 : i32
    %c0_i32_0 = arith.constant 0 : i32
    %c0_i32_1 = arith.constant 0 : i32
    return %c0_i32, %c0_i32_0, %arg1 : i32, i32, i32
  }
  func.func @transform_2(%arg0: i32, %arg1: i32) -> (i32, i32, i32) {
    %c0_i32 = arith.constant 0 : i32
    %c0_i32_0 = arith.constant 0 : i32
    return %arg0, %c0_i32, %arg1 : i32, i32, i32
  }
}

</mosaic_0001>

<llo_original>
// kernel: tpu_custom_call.1
$region0: #{tpu_custom_call.1}
  #allocation0 [shape = 'u32[]', space=smem, size = 0x4, offset = 0x4, fixed_abs, tag = 'smem constant byte address 0x4 - core index']
  #allocation1 [shape = 'u32[144,128]{1,0:T(1,128)}', space=vmem, size = 0x12000, scoped, tag = 'internal scratch']
  %s0 = inlined_call_operand.hbm [shape: f32[2,8,32], index: 0, kind: input, shape index: {}]
  %s1 = inlined_call_operand.hbm [shape: f32[1,8,32], index: 1, kind: input, shape index: {}]
  %s2 = inlined_call_operand.hbm [shape: f32[2,8,32], index: 2, kind: output, shape index: {}]
  %s3 = sld [smem:[#allocation0]]
  $region26: #{tpu_custom_call.1} parent=0
    _
  %s5 = ssub.s32 1, %s3
  %s6 = scalar_select 0, %s5, %s3
  $region1: #{tpu_custom_call.1} parent=0
    #allocation2 [shape = 'u8[8192]{0}', space=vmem, size = 0x2000, scoped, tag = 'input window, operand 0, single buffered']
    #allocation3 [shape = 's32[1]{0}', space=sflag, size = 0x4, scoped, tag = 'scoped memory for tpu_custom_call.1']
    #allocation4 [shape = 's32[1]{0}', space=sflag, size = 0x4, scoped, tag = 'scoped memory for tpu_custom_call.1']
    #allocation5 [shape = 'u8[4096]{0}', space=vmem, size = 0x1000, scoped, tag = 'input window, operand 1, single buffered']
    #allocation6 [shape = 's32[1]{0}', space=sflag, size = 0x4, scoped, tag = 'scoped memory for tpu_custom_call.1']
    #allocation7 [shape = 'u8[8192]{0}', space=vmem, size = 0x2000, scoped, tag = 'output window, operand 0, single buffered']
    %7 = vsyncpa [#allocation3], 0
    %8 = vsyncpa [#allocation6], 0
    %9 = vsyncpa [#allocation4], 0
    // Predicated region
    $region2: #{tpu_custom_call.1} parent=1 // pred_check
      _
    $region3: #{tpu_custom_call.1} parent=1 // pred_check_branch
      %11 = sbr.rel (0) target = $region5
    $region4: #{tpu_custom_call.1} parent=1 // pred_region
      %s13 = ssub.s32 256, 256
      %14 = vsyncadd [#allocation3], %s13
      %s15 = sshll.u32 [#allocation2], 4
      %s16 = int_to_ptr.vmem [resolvable:$true] %s15
      %21 = dma.hbm_to_vmem [thread:$0]  %s0, 256, %s16, [#allocation3], 128, 128, 8
    $region5: #{tpu_custom_call.1} parent=1 // pred_fallthru
      _
    // Predicated region
    $region6: #{tpu_custom_call.1} parent=1 // pred_check
      _
    $region7: #{tpu_custom_call.1} parent=1 // pred_check_branch
      %23 = sbr.rel (0) target = $region9
    $region8: #{tpu_custom_call.1} parent=1 // pred_region
      %s25 = ssub.s32 128, 128
      %26 = vsyncadd [#allocation6], %s25
      %s28 = sshll.u32 [#allocation5], 4
      %s29 = int_to_ptr.vmem [resolvable:$true] %s28
      %31 = dma.hbm_to_vmem [thread:$0]  %s1, 128, %s29, [#allocation6]
    $region9: #{tpu_custom_call.1} parent=1 // pred_fallthru
      _
    // Predicated region
    $region10: #{tpu_custom_call.1} parent=1 // pred_check
      _
    $region11: #{tpu_custom_call.1} parent=1 // pred_check_branch
      %33 = sbr.rel (0) target = $region13
    $region12: #{tpu_custom_call.1} parent=1 // pred_region
      %34 = dma.done [#allocation3], 256
    $region13: #{tpu_custom_call.1} parent=1 // pred_fallthru
      _
    // Predicated region
    $region14: #{tpu_custom_call.1} parent=1 // pred_check
      _
    $region15: #{tpu_custom_call.1} parent=1 // pred_check_branch
      %36 = sbr.rel (0) target = $region17
    $region16: #{tpu_custom_call.1} parent=1 // pred_region
      %37 = dma.done [#allocation6], 128
    $region17: #{tpu_custom_call.1} parent=1 // pred_fallthru
      _
    %v38 = vld [vmem:[#allocation2] sm:$0xff]
    %v39 = vld [vmem:[#allocation2 + $0x8] sm:$0xff]
    %v40 = vld [vmem:[#allocation5] sm:$0xff]
    %v41 = vadd.f32 %v38, %v40
    %v42 = vadd.f32 %v39, %v40
    %vm43 = vcmask 261120
    %44 = vst.msk [vmem:[#allocation7] sm:$0xff] %vm43, %v41
    %45 = vst.msk [vmem:[#allocation7 + $0x8] sm:$0xff] %vm43, %v42
    // Predicated region
    $region18: #{tpu_custom_call.1} parent=1 // pred_check
      _
    $region19: #{tpu_custom_call.1} parent=1 // pred_check_branch
      %47 = sbr.rel (0) target = $region21
    $region20: #{tpu_custom_call.1} parent=1 // pred_region
      %s49 = ssub.s32 256, 256
      %50 = vsyncadd [#allocation4], %s49
      %s51 = sshll.u32 [#allocation7], 4
      %s52 = int_to_ptr.vmem [resolvable:$true] %s51
      %57 = dma.vmem_to_hbm [thread:$0]  %s52, 256, %s2, [#allocation4], 128, 128, 8
    $region21: #{tpu_custom_call.1} parent=1 // pred_fallthru
      _
    // Predicated region
    $region22: #{tpu_custom_call.1} parent=1 // pred_check
      _
    $region23: #{tpu_custom_call.1} parent=1 // pred_check_branch
      %59 = sbr.rel (0) target = $region25
    $region24: #{tpu_custom_call.1} parent=1 // pred_region
      %60 = dma.done [#allocation4], 256
    $region25: #{tpu_custom_call.1} parent=1 // pred_fallthru
      _
    %61 = vsyncpa [#allocation3], 1
    %62 = vsyncpa [#allocation6], 1
    %63 = vsyncpa [#allocation4], 1

</llo_original>
